<compile_context>
chip_gen: v5e
topology: v5e:2x2
jax: 0.10.0
libtpu: 0.0.40
codegen_flags: <defaults>
</compile_context>

<pallas_src>
import functools

import jax
import jax.numpy as jnp
from jax.experimental import pallas as pl
from jax.experimental.pallas import tpu as pltpu


def _round_up(n, m):
    return ((n + m - 1) // m) * m


def v2a_block_kernel(x_ref, w1_ref, b1_ref, w2_ref, p_ref, o_ref, acc_ref, *,
                     eps, d_real, mm_dtype):
    """One (tm, Dp) row tile x one (th) slice of the hidden dim.

    grid = (row_tiles, hidden_tiles); the hidden axis is a reduction: partial
    linear2 results accumulate into acc_ref, residual + LayerNorm run on the
    last hidden step.  Dropout is eval-mode identity.
    """
    k = pl.program_id(1)
    nk = pl.num_programs(1)

    x = x_ref[...]                                        # (tm, Dp), native dtype
    xm = x if x.dtype == mm_dtype else x.astype(mm_dtype)

    # linear1 (this H slice) + bias + ReLU.  ReLU is elementwise over H, so the
    # H split commutes with linear2's reduction over H.
    h = jnp.dot(xm, w1_ref[...], preferred_element_type=jnp.float32)
    h = jnp.maximum(h + b1_ref[...].astype(jnp.float32), 0.0)

    # Partial linear2 contribution of this H slice (f32 accumulation).
    y = jnp.dot(h.astype(w2_ref.dtype), w2_ref[...],
                preferred_element_type=jnp.float32)

    @pl.when(k == 0)
    def _():
        acc_ref[...] = jnp.zeros_like(acc_ref)

    acc_ref[...] += y

    @pl.when(k == nk - 1)
    def _():
        p = p_ref[...].astype(jnp.float32)                # (3, Dp) = [b2; gamma; beta]
        b2 = p[0:1, :]
        gamma = p[1:2, :]
        beta = p[2:3, :]
        z = acc_ref[...] + b2 + x.astype(jnp.float32)     # residual
        # LayerNorm over the real D lanes; padded lanes of z are exactly zero
        # by construction (zero-padded x / w2 columns / b2).
        inv_d = 1.0 / d_real
        s1 = jnp.sum(z, axis=-1, keepdims=True)
        s2 = jnp.sum(z * z, axis=-1, keepdims=True)
        mean = s1 * inv_d
        var = s2 * inv_d - mean * mean
        zn = (z - mean) * jax.lax.rsqrt(var + eps)
        o_ref[...] = (zn * gamma + beta).astype(o_ref.dtype)   # padded lanes -> 0


def v2a_block(x, w1, b1, w2, b2, gamma, beta, *, eps=1e-5, tm=256,
              block_h=None, matmul_dtype=None,
              resident_weight_bytes=32 * 1024 * 1024):
    """x: (B, S, D).  w1: (D, H), b1: (H,), w2: (H, D), b2/gamma/beta: (D,)."""
    B, S, D = x.shape
    H = w1.shape[1]
    M = B * S

    mm_dtype = jnp.dtype(matmul_dtype) if matmul_dtype is not None else jnp.dtype(x.dtype)
    in_item = jnp.dtype(x.dtype).itemsize
    w_item = mm_dtype.itemsize

    # Lane-dense padding of the feature dims (multiples of 128 lanes).
    Dp = _round_up(D, 128)
    Hp = _round_up(H, 128)

    # Row tile: multiple of 8, clamped to the token count.  256 keeps the f32
    # intermediates comfortably inside v7x's 64 MiB per-TC VMEM.
    tm = max(8, min(_round_up(tm, 8), _round_up(M, 8)))
    Mp = _round_up(M, tm)

    # Hidden-dim tile: keep the weights fully resident when they fit, otherwise
    # tile the hidden dim (reduction grid axis).
    if block_h is not None:
        th = min(_round_up(block_h, 128), Hp)
    elif 2 * Dp * Hp * w_item <= resident_weight_bytes:
        th = Hp
    else:
        per_h = 2 * (2 * Dp) * w_item          # double-buffered w1 column + w2 row
        th = (resident_weight_bytes // per_h) // 256 * 256
        th = int(max(256, min(th, Hp)))
    Hp = _round_up(Hp, th)
    nk = Hp // th
    resident = nk == 1

    # Pad / cast operands (pads skipped when already aligned; padded values = 0).
    x2 = x.reshape(M, D)
    if (Mp, Dp) != (M, D):
        x2 = jnp.pad(x2, ((0, Mp - M), (0, Dp - D)))
    w1p = w1 if (Dp, Hp) == (D, H) else jnp.pad(w1, ((0, Dp - D), (0, Hp - H)))
    w2p = w2 if (Hp, Dp) == (H, D) else jnp.pad(w2, ((0, Hp - H), (0, Dp - D)))
    b1p = (b1 if Hp == H else jnp.pad(b1, (0, Hp - H))).reshape(1, Hp)
    if mm_dtype != w1p.dtype:
        w1p = w1p.astype(mm_dtype)
        w2p = w2p.astype(mm_dtype)

    def pad_d(v):
        return v if Dp == D else jnp.pad(v, (0, Dp - D))

    params = jnp.stack([pad_d(b2), pad_d(gamma), pad_d(beta)], axis=0)   # (3, Dp)

    kernel = functools.partial(v2a_block_kernel, eps=eps, d_real=float(D),
                               mm_dtype=mm_dtype)

    # Explicit scoped-VMEM budget (the 16/32 MiB defaults would throttle the
    # resident-weight + pipelined-x schedule).
    w_bufs = 1 if resident else 2
    vmem_bytes = (
        2 * tm * Dp * in_item                              # x (double-buffered)
        + 2 * tm * Dp * in_item                            # out (double-buffered)
        + w_bufs * (Dp * th + th * Dp + 8 * th) * w_item   # w1, w2, b1
        + 8 * Dp * w_item                                  # [b2; gamma; beta]
        + tm * Dp * 4                                      # f32 accumulator scratch
        + 2 * tm * th * 4 + 2 * tm * Dp * 4                # h / y / z temporaries
    )
    vmem_limit = int(min(max(2 * vmem_bytes, 32 * 1024 * 1024), 110 * 1024 * 1024))

    cost = pl.CostEstimate(
        flops=2 * Mp * (Dp * Hp + Hp * Dp),
        transcendentals=Mp,
        bytes_accessed=(2 * Mp * Dp * in_item
                        + (Dp * Hp + Hp * Dp + Hp) * w_item + 3 * Dp * 4),
    )

    def build(use_single_buffering):
        def spec(shape, imap, constant=False):
            if constant and use_single_buffering:
                # Constant-index operand: one buffer is enough, reclaim VMEM.
                return pl.BlockSpec(shape, imap, pipeline_mode=pl.Buffered(1))
            return pl.BlockSpec(shape, imap)

        return pl.pallas_call(
            kernel,
            out_shape=jax.ShapeDtypeStruct((Mp, Dp), x.dtype),
            grid_spec=pltpu.PrefetchScalarGridSpec(
                num_scalar_prefetch=0,
                grid=(Mp // tm, nk),
                in_specs=[
                    spec((tm, Dp), lambda i, k: (i, 0)),                      # x rows
                    spec((Dp, th), lambda i, k: (0, k), constant=resident),   # w1
                    spec((1, th), lambda i, k: (0, k), constant=resident),    # b1
                    spec((th, Dp), lambda i, k: (k, 0), constant=resident),   # w2
                    spec((3, Dp), lambda i, k: (0, 0), constant=True),        # b2/gamma/beta
                ],
                out_specs=spec((tm, Dp), lambda i, k: (i, 0)),
                scratch_shapes=[pltpu.VMEM((tm, Dp), jnp.float32)],
            ),
            compiler_params=pltpu.CompilerParams(
                dimension_semantics=("parallel", "arbitrary"),
                vmem_limit_bytes=vmem_limit),
            cost_estimate=cost,
        )

    try:
        out = build(True)(x2, w1p, b1p, w2p, params)
    except Exception:
        # Fallback for environments where pipeline_mode=pl.Buffered is unsupported.
        out = build(False)(x2, w1p, b1p, w2p, params)

    if (Mp, Dp) != (M, D):
        out = out[:M, :D]
    return out.reshape(B, S, D)


def reference(x, w1, b1, w2, b2, gamma, beta, eps=1e-5):
    h = jnp.maximum(x @ w1 + b1, 0.0)
    y = h @ w2 + b2
    z = y + x
    mean = jnp.mean(z, axis=-1, keepdims=True)
    var = jnp.mean((z - mean) ** 2, axis=-1, keepdims=True)
    return (z - mean) / jnp.sqrt(var + eps) * gamma + beta


if __name__ == "__main__":
    # Small config matching the PyTorch module: dim=32, expansion_rate=2.
    B, S, dim = 2, 8, 32
    hidden_dim = dim * 2

    key = jax.random.PRNGKey(0)
    k_x, k_w1, k_b1, k_w2, k_b2 = jax.random.split(key, 5)

    x = jax.random.normal(k_x, (B, S, dim), dtype=jnp.float32)
    w1 = jax.random.normal(k_w1, (dim, hidden_dim), dtype=jnp.float32) * (1.0 / dim ** 0.5)
    b1 = jax.random.normal(k_b1, (hidden_dim,), dtype=jnp.float32) * 0.01
    w2 = jax.random.normal(k_w2, (hidden_dim, dim), dtype=jnp.float32) * (1.0 / hidden_dim ** 0.5)
    b2 = jax.random.normal(k_b2, (dim,), dtype=jnp.float32) * 0.01
    gamma = jnp.ones((dim,), dtype=jnp.float32)
    beta = jnp.zeros((dim,), dtype=jnp.float32)

    out = jax.block_until_ready(v2a_block(x, w1, b1, w2, b2, gamma, beta))
    ref = reference(x, w1, b1, w2, b2, gamma, beta)
    assert out.shape == (B, S, dim)
    assert jnp.allclose(out, ref, atol=1e-5, rtol=1e-5), "resident-weight path mismatch"

    # Also exercise the H-tiled reduction path (nk > 1) at small scale.
    dim2 = 128
    hid2 = dim2 * 2
    key2 = jax.random.PRNGKey(1)
    j_x, j_w1, j_b1, j_w2, j_b2 = jax.random.split(key2, 5)
    x2 = jax.random.normal(j_x, (B, S, dim2), dtype=jnp.float32)
    w1b = jax.random.normal(j_w1, (dim2, hid2), dtype=jnp.float32) * (1.0 / dim2 ** 0.5)
    b1b = jax.random.normal(j_b1, (hid2,), dtype=jnp.float32) * 0.01
    w2b = jax.random.normal(j_w2, (hid2, dim2), dtype=jnp.float32) * (1.0 / hid2 ** 0.5)
    b2b = jax.random.normal(j_b2, (dim2,), dtype=jnp.float32) * 0.01
    g2 = jnp.ones((dim2,), dtype=jnp.float32)
    be2 = jnp.zeros((dim2,), dtype=jnp.float32)

    out2 = jax.block_until_ready(
        v2a_block(x2, w1b, b1b, w2b, b2b, g2, be2, block_h=128))
    ref2 = reference(x2, w1b, b1b, w2b, b2b, g2, be2)
    assert out2.shape == (B, S, dim2)
    assert jnp.allclose(out2, ref2, atol=1e-4, rtol=1e-4), "H-tiled path mismatch"

    print("KERNEL_OK")
</pallas_src>

<mosaic_0001>
module attributes {stable_mosaic.version = 11 : i64} {
  func.func @v2a_block_kernel(%arg0: i32, %arg1: i32, %arg2: memref<16x128xf32, #tpu.memory_space<vmem>>, %arg3: memref<128x128xf32, #tpu.memory_space<vmem>>, %arg4: memref<1x128xf32, #tpu.memory_space<vmem>>, %arg5: memref<128x128xf32, #tpu.memory_space<vmem>>, %arg6: memref<3x128xf32, #tpu.memory_space<vmem>>, %arg7: memref<16x128xf32, #tpu.memory_space<vmem>>, %arg8: memref<16x128xf32, #tpu.memory_space<vmem>>) attributes {dimension_semantics = [#tpu.dimension_semantics<parallel>, #tpu.dimension_semantics<arbitrary>], iteration_bounds = array<i64: 1, 1>, scalar_prefetch = 0 : i64, scratch_operands = 1 : i64, tpu.core_type = #tpu.core_type<tc>, window_params = [{transform_indices = @transform_0, window_bounds = array<i64: 16, 128>}, {pipeline_mode = #tpu.pipeline_mode<synchronous>, transform_indices = @transform_1, window_bounds = array<i64: 128, 128>}, {pipeline_mode = #tpu.pipeline_mode<synchronous>, transform_indices = @transform_2, window_bounds = array<i64: 1, 128>}, {pipeline_mode = #tpu.pipeline_mode<synchronous>, transform_indices = @transform_3, window_bounds = array<i64: 128, 128>}, {pipeline_mode = #tpu.pipeline_mode<synchronous>, transform_indices = @transform_4, window_bounds = array<i64: 3, 128>}, {transform_indices = @transform_5, window_bounds = array<i64: 16, 128>}]} {
    %c0 = arith.constant 0 : index
    %c0_0 = arith.constant 0 : index
    %0 = vector.load %arg2[%c0, %c0_0] : memref<16x128xf32, #tpu.memory_space<vmem>>, vector<16x128xf32>
    %c0_1 = arith.constant 0 : index
    %c0_2 = arith.constant 0 : index
    %1 = vector.load %arg3[%c0_1, %c0_2] : memref<128x128xf32, #tpu.memory_space<vmem>>, vector<128x128xf32>
    %cst = arith.constant dense<0.000000e+00> : vector<16x128xf32>
    %2 = tpu.matmul %0, %1, %cst {dimension_numbers = #tpu.dot_dimension_numbers<[1], [0], [0], [1], [0, 0, 1, 1], [], []>} : vector<16x128xf32>, vector<128x128xf32>, vector<16x128xf32> -> vector<16x128xf32>
    %c0_3 = arith.constant 0 : index
    %c0_4 = arith.constant 0 : index
    %3 = vector.load %arg4[%c0_3, %c0_4] : memref<1x128xf32, #tpu.memory_space<vmem>>, vector<1x128xf32>
    %4 = vector.broadcast %3 : vector<1x128xf32> to vector<16x128xf32>
    %5 = arith.addf %2, %4 : vector<16x128xf32>
    %cst_5 = arith.constant 0.000000e+00 : f32
    %6 = vector.broadcast %cst_5 : f32 to vector<16x128xf32>
    %7 = arith.maximumf %5, %6 : vector<16x128xf32>
    %c0_6 = arith.constant 0 : index
    %c0_7 = arith.constant 0 : index
    %8 = vector.load %arg5[%c0_6, %c0_7] : memref<128x128xf32, #tpu.memory_space<vmem>>, vector<128x128xf32>
    %cst_8 = arith.constant dense<0.000000e+00> : vector<16x128xf32>
    %9 = tpu.matmul %7, %8, %cst_8 {dimension_numbers = #tpu.dot_dimension_numbers<[1], [0], [0], [1], [0, 0, 1, 1], [], []>} : vector<16x128xf32>, vector<128x128xf32>, vector<16x128xf32> -> vector<16x128xf32>
    %c0_i32 = arith.constant 0 : i32
    %10 = arith.cmpi eq, %arg1, %c0_i32 : i32
    %11 = arith.extui %10 : i1 to i32
    %c0_i32_9 = arith.constant 0 : i32
    %12 = arith.cmpi ne, %11, %c0_i32_9 : i32
    scf.if %12 {
      %cst_16 = arith.constant 0.000000e+00 : f32
      %19 = vector.broadcast %cst_16 : f32 to vector<16x128xf32>
      %c0_17 = arith.constant 0 : index
      %c0_18 = arith.constant 0 : index
      %20 = vector.load %arg8[%c0_17, %c0_18] : memref<16x128xf32, #tpu.memory_space<vmem>>, vector<16x128xf32>
      tpu.vector_store %arg8[%c0_17, %c0_18], %19 {strides = array<i32>} : memref<16x128xf32, #tpu.memory_space<vmem>>, vector<16x128xf32>,
    } else {
    }
    %c0_10 = arith.constant 0 : index
    %c0_11 = arith.constant 0 : index
    %13 = vector.load %arg8[%c0_10, %c0_11] : memref<16x128xf32, #tpu.memory_space<vmem>>, vector<16x128xf32>
    %14 = arith.addf %13, %9 : vector<16x128xf32>
    %c0_12 = arith.constant 0 : index
    %c0_13 = arith.constant 0 : index
    %15 = vector.load %arg8[%c0_12, %c0_13] : memref<16x128xf32, #tpu.memory_space<vmem>>, vector<16x128xf32>
    tpu.vector_store %arg8[%c0_12, %c0_13], %14 {strides = array<i32>} : memref<16x128xf32, #tpu.memory_space<vmem>>, vector<16x128xf32>,
    %c0_i32_14 = arith.constant 0 : i32
    %16 = arith.cmpi eq, %arg1, %c0_i32_14 : i32
    %17 = arith.extui %16 : i1 to i32
    %c0_i32_15 = arith.constant 0 : i32
    %18 = arith.cmpi ne, %17, %c0_i32_15 : i32
    scf.if %18 {
      %c0_16 = arith.constant 0 : index
      %c0_17 = arith.constant 0 : index
      %19 = vector.load %arg6[%c0_16, %c0_17] : memref<3x128xf32, #tpu.memory_space<vmem>>, vector<3x128xf32>
      %20 = vector.extract_strided_slice %19 {offsets = [0, 0], sizes = [1, 128], strides = [1, 1]} : vector<3x128xf32> to vector<1x128xf32>
      %21 = vector.extract_strided_slice %19 {offsets = [1, 0], sizes = [1, 128], strides = [1, 1]} : vector<3x128xf32> to vector<1x128xf32>
      %22 = vector.extract_strided_slice %19 {offsets = [2, 0], sizes = [1, 128], strides = [1, 1]} : vector<3x128xf32> to vector<1x128xf32>
      %c0_18 = arith.constant 0 : index
      %c0_19 = arith.constant 0 : index
      %23 = vector.load %arg8[%c0_18, %c0_19] : memref<16x128xf32, #tpu.memory_space<vmem>>, vector<16x128xf32>
      %24 = vector.broadcast %20 : vector<1x128xf32> to vector<16x128xf32>
      %25 = arith.addf %23, %24 : vector<16x128xf32>
      %26 = arith.addf %25, %0 : vector<16x128xf32>
      %cst_20 = arith.constant dense<0.000000e+00> : vector<16xf32>
      %27 = vector.multi_reduction <add>, %26, %cst_20 [1] : vector<16x128xf32> to vector<16xf32>
      %28 = vector.shape_cast %27 : vector<16xf32> to vector<16x1xf32>
      %29 = arith.mulf %26, %26 : vector<16x128xf32>
      %cst_21 = arith.constant dense<0.000000e+00> : vector<16xf32>
      %30 = vector.multi_reduction <add>, %29, %cst_21 [1] : vector<16x128xf32> to vector<16xf32>
      %31 = vector.shape_cast %30 : vector<16xf32> to vector<16x1xf32>
      %cst_22 = arith.constant 3.125000e-02 : f32
      %32 = vector.broadcast %cst_22 : f32 to vector<16x1xf32>
      %33 = arith.mulf %28, %32 : vector<16x1xf32>
      %cst_23 = arith.constant 3.125000e-02 : f32
      %34 = vector.broadcast %cst_23 : f32 to vector<16x1xf32>
      %35 = arith.mulf %31, %34 : vector<16x1xf32>
      %36 = arith.mulf %33, %33 : vector<16x1xf32>
      %37 = arith.subf %35, %36 : vector<16x1xf32>
      %38 = vector.broadcast %33 : vector<16x1xf32> to vector<16x128xf32>
      %39 = arith.subf %26, %38 : vector<16x128xf32>
      %cst_24 = arith.constant 9.99999974E-6 : f32
      %40 = vector.broadcast %cst_24 : f32 to vector<16x1xf32>
      %41 = arith.addf %37, %40 : vector<16x1xf32>
      %42 = math.rsqrt %41 : vector<16x1xf32>
      %43 = vector.broadcast %42 : vector<16x1xf32> to vector<16x128xf32>
      %44 = arith.mulf %39, %43 : vector<16x128xf32>
      %45 = vector.broadcast %21 : vector<1x128xf32> to vector<16x128xf32>
      %46 = arith.mulf %44, %45 : vector<16x128xf32>
      %47 = vector.broadcast %22 : vector<1x128xf32> to vector<16x128xf32>
      %48 = arith.addf %46, %47 : vector<16x128xf32>
      %c0_25 = arith.constant 0 : index
      %c0_26 = arith.constant 0 : index
      %49 = vector.load %arg7[%c0_25, %c0_26] : memref<16x128xf32, #tpu.memory_space<vmem>>, vector<16x128xf32>
      tpu.vector_store %arg7[%c0_25, %c0_26], %48 {strides = array<i32>} : memref<16x128xf32, #tpu.memory_space<vmem>>, vector<16x128xf32>,
    } else {
    }
    return
  }
  func.func @transform_0(%arg0: i32, %arg1: i32) -> (i32, i32) {
    %c0_i32 = arith.constant 0 : i32
    %c0_i32_0 = arith.constant 0 : i32
    return %arg0, %c0_i32 : i32, i32
  }
  func.func @transform_1(%arg0: i32, %arg1: i32) -> (i32, i32) {
    %c0_i32 = arith.constant 0 : i32
    %c0_i32_0 = arith.constant 0 : i32
    return %c0_i32, %arg1 : i32, i32
  }
  func.func @transform_2(%arg0: i32, %arg1: i32) -> (i32, i32) {
    %c0_i32 = arith.constant 0 : i32
    %c0_i32_0 = arith.constant 0 : i32
    return %c0_i32, %arg1 : i32, i32
  }
  func.func @transform_3(%arg0: i32, %arg1: i32) -> (i32, i32) {
    %c0_i32 = arith.constant 0 : i32
    %c0_i32_0 = arith.constant 0 : i32
    return %arg1, %c0_i32 : i32, i32
  }
  func.func @transform_4(%arg0: i32, %arg1: i32) -> (i32, i32) {
    %c0_i32 = arith.constant 0 : i32
    %c0_i32_0 = arith.constant 0 : i32
    %c0_i32_1 = arith.constant 0 : i32
    return %c0_i32, %c0_i32_0 : i32, i32
  }
  func.func @transform_5(%arg0: i32, %arg1: i32) -> (i32, i32) {
    %c0_i32 = arith.constant 0 : i32
    %c0_i32_0 = arith.constant 0 : i32
    return %arg0, %c0_i32 : i32, i32
  }
}

module attributes {stable_mosaic.version = 11 : i64} {
  func.func @v2a_block_kernel(%arg0: i32, %arg1: i32, %arg2: memref<16x128xf32, #tpu.memory_space<vmem>>, %arg3: memref<128x128xf32, #tpu.memory_space<vmem>>, %arg4: memref<1x128xf32, #tpu.memory_space<vmem>>, %arg5: memref<128x128xf32, #tpu.memory_space<vmem>>, %arg6: memref<3x128xf32, #tpu.memory_space<vmem>>, %arg7: memref<16x128xf32, #tpu.memory_space<vmem>>, %arg8: memref<16x128xf32, #tpu.memory_space<vmem>>) attributes {dimension_semantics = [#tpu.dimension_semantics<parallel>, #tpu.dimension_semantics<arbitrary>], iteration_bounds = array<i64: 1, 1>, scalar_prefetch = 0 : i64, scratch_operands = 1 : i64, tpu.core_type = #tpu.core_type<tc>, window_params = [{transform_indices = @transform_0, window_bounds = array<i64: 16, 128>}, {transform_indices = @transform_1, window_bounds = array<i64: 128, 128>}, {transform_indices = @transform_2, window_bounds = array<i64: 1, 128>}, {transform_indices = @transform_3, window_bounds = array<i64: 128, 128>}, {pipeline_mode = #tpu.pipeline_mode<synchronous>, transform_indices = @transform_4, window_bounds = array<i64: 3, 128>}, {transform_indices = @transform_5, window_bounds = array<i64: 16, 128>}]} {
    %c0 = arith.constant 0 : index
    %c0_0 = arith.constant 0 : index
    %0 = vector.load %arg2[%c0, %c0_0] : memref<16x128xf32, #tpu.memory_space<vmem>>, vector<16x128xf32>
    %c0_1 = arith.constant 0 : index
    %c0_2 = arith.constant 0 : index
    %1 = vector.load %arg3[%c0_1, %c0_2] : memref<128x128xf32, #tpu.memory_space<vmem>>, vector<128x128xf32>
    %cst = arith.constant dense<0.000000e+00> : vector<16x128xf32>
    %2 = tpu.matmul %0, %1, %cst {dimension_numbers = #tpu.dot_dimension_numbers<[1], [0], [0], [1], [0, 0, 1, 1], [], []>} : vector<16x128xf32>, vector<128x128xf32>, vector<16x128xf32> -> vector<16x128xf32>
    %c0_3 = arith.constant 0 : index
    %c0_4 = arith.constant 0 : index
    %3 = vector.load %arg4[%c0_3, %c0_4] : memref<1x128xf32, #tpu.memory_space<vmem>>, vector<1x128xf32>
    %4 = vector.broadcast %3 : vector<1x128xf32> to vector<16x128xf32>
    %5 = arith.addf %2, %4 : vector<16x128xf32>
    %cst_5 = arith.constant 0.000000e+00 : f32
    %6 = vector.broadcast %cst_5 : f32 to vector<16x128xf32>
    %7 = arith.maximumf %5, %6 : vector<16x128xf32>
    %c0_6 = arith.constant 0 : index
    %c0_7 = arith.constant 0 : index
    %8 = vector.load %arg5[%c0_6, %c0_7] : memref<128x128xf32, #tpu.memory_space<vmem>>, vector<128x128xf32>
    %cst_8 = arith.constant dense<0.000000e+00> : vector<16x128xf32>
    %9 = tpu.matmul %7, %8, %cst_8 {dimension_numbers = #tpu.dot_dimension_numbers<[1], [0], [0], [1], [0, 0, 1, 1], [], []>} : vector<16x128xf32>, vector<128x128xf32>, vector<16x128xf32> -> vector<16x128xf32>
    %c0_i32 = arith.constant 0 : i32
    %10 = arith.cmpi eq, %arg1, %c0_i32 : i32
    %11 = arith.extui %10 : i1 to i32
    %c0_i32_9 = arith.constant 0 : i32
    %12 = arith.cmpi ne, %11, %c0_i32_9 : i32
    scf.if %12 {
      %cst_16 = arith.constant 0.000000e+00 : f32
      %19 = vector.broadcast %cst_16 : f32 to vector<16x128xf32>
      %c0_17 = arith.constant 0 : index
      %c0_18 = arith.constant 0 : index
      %20 = vector.load %arg8[%c0_17, %c0_18] : memref<16x128xf32, #tpu.memory_space<vmem>>, vector<16x128xf32>
      tpu.vector_store %arg8[%c0_17, %c0_18], %19 {strides = array<i32>} : memref<16x128xf32, #tpu.memory_space<vmem>>, vector<16x128xf32>,
    } else {
    }
    %c0_10 = arith.constant 0 : index
    %c0_11 = arith.constant 0 : index
    %13 = vector.load %arg8[%c0_10, %c0_11] : memref<16x128xf32, #tpu.memory_space<vmem>>, vector<16x128xf32>
    %14 = arith.addf %13, %9 : vector<16x128xf32>
    %c0_12 = arith.constant 0 : index
    %c0_13 = arith.constant 0 : index
    %15 = vector.load %arg8[%c0_12, %c0_13] : memref<16x128xf32, #tpu.memory_space<vmem>>, vector<16x128xf32>
    tpu.vector_store %arg8[%c0_12, %c0_13], %14 {strides = array<i32>} : memref<16x128xf32, #tpu.memory_space<vmem>>, vector<16x128xf32>,
    %c0_i32_14 = arith.constant 0 : i32
    %16 = arith.cmpi eq, %arg1, %c0_i32_14 : i32
    %17 = arith.extui %16 : i1 to i32
    %c0_i32_15 = arith.constant 0 : i32
    %18 = arith.cmpi ne, %17, %c0_i32_15 : i32
    scf.if %18 {
      %c0_16 = arith.constant 0 : index
      %c0_17 = arith.constant 0 : index
      %19 = vector.load %arg6[%c0_16, %c0_17] : memref<3x128xf32, #tpu.memory_space<vmem>>, vector<3x128xf32>
      %20 = vector.extract_strided_slice %19 {offsets = [0, 0], sizes = [1, 128], strides = [1, 1]} : vector<3x128xf32> to vector<1x128xf32>
      %21 = vector.extract_strided_slice %19 {offsets = [1, 0], sizes = [1, 128], strides = [1, 1]} : vector<3x128xf32> to vector<1x128xf32>
      %22 = vector.extract_strided_slice %19 {offsets = [2, 0], sizes = [1, 128], strides = [1, 1]} : vector<3x128xf32> to vector<1x128xf32>
      %c0_18 = arith.constant 0 : index
      %c0_19 = arith.constant 0 : index
      %23 = vector.load %arg8[%c0_18, %c0_19] : memref<16x128xf32, #tpu.memory_space<vmem>>, vector<16x128xf32>
      %24 = vector.broadcast %20 : vector<1x128xf32> to vector<16x128xf32>
      %25 = arith.addf %23, %24 : vector<16x128xf32>
      %26 = arith.addf %25, %0 : vector<16x128xf32>
      %cst_20 = arith.constant dense<0.000000e+00> : vector<16xf32>
      %27 = vector.multi_reduction <add>, %26, %cst_20 [1] : vector<16x128xf32> to vector<16xf32>
      %28 = vector.shape_cast %27 : vector<16xf32> to vector<16x1xf32>
      %29 = arith.mulf %26, %26 : vector<16x128xf32>
      %cst_21 = arith.constant dense<0.000000e+00> : vector<16xf32>
      %30 = vector.multi_reduction <add>, %29, %cst_21 [1] : vector<16x128xf32> to vector<16xf32>
      %31 = vector.shape_cast %30 : vector<16xf32> to vector<16x1xf32>
      %cst_22 = arith.constant 3.125000e-02 : f32
      %32 = vector.broadcast %cst_22 : f32 to vector<16x1xf32>
      %33 = arith.mulf %28, %32 : vector<16x1xf32>
      %cst_23 = arith.constant 3.125000e-02 : f32
      %34 = vector.broadcast %cst_23 : f32 to vector<16x1xf32>
      %35 = arith.mulf %31, %34 : vector<16x1xf32>
      %36 = arith.mulf %33, %33 : vector<16x1xf32>
      %37 = arith.subf %35, %36 : vector<16x1xf32>
      %38 = vector.broadcast %33 : vector<16x1xf32> to vector<16x128xf32>
      %39 = arith.subf %26, %38 : vector<16x128xf32>
      %cst_24 = arith.constant 9.99999974E-6 : f32
      %40 = vector.broadcast %cst_24 : f32 to vector<16x1xf32>
      %41 = arith.addf %37, %40 : vector<16x1xf32>
      %42 = math.rsqrt %41 : vector<16x1xf32>
      %43 = vector.broadcast %42 : vector<16x1xf32> to vector<16x128xf32>
      %44 = arith.mulf %39, %43 : vector<16x128xf32>
      %45 = vector.broadcast %21 : vector<1x128xf32> to vector<16x128xf32>
      %46 = arith.mulf %44, %45 : vector<16x128xf32>
      %47 = vector.broadcast %22 : vector<1x128xf32> to vector<16x128xf32>
      %48 = arith.addf %46, %47 : vector<16x128xf32>
      %c0_25 = arith.constant 0 : index
      %c0_26 = arith.constant 0 : index
      %49 = vector.load %arg7[%c0_25, %c0_26] : memref<16x128xf32, #tpu.memory_space<vmem>>, vector<16x128xf32>
      tpu.vector_store %arg7[%c0_25, %c0_26], %48 {strides = array<i32>} : memref<16x128xf32, #tpu.memory_space<vmem>>, vector<16x128xf32>,
    } else {
    }
    return
  }
  func.func @transform_0(%arg0: i32, %arg1: i32) -> (i32, i32) {
    %c0_i32 = arith.constant 0 : i32
    %c0_i32_0 = arith.constant 0 : i32
    return %arg0, %c0_i32 : i32, i32
  }
  func.func @transform_1(%arg0: i32, %arg1: i32) -> (i32, i32) {
    %c0_i32 = arith.constant 0 : i32
    %c0_i32_0 = arith.constant 0 : i32
    return %c0_i32, %arg1 : i32, i32
  }
  func.func @transform_2(%arg0: i32, %arg1: i32) -> (i32, i32) {
    %c0_i32 = arith.constant 0 : i32
    %c0_i32_0 = arith.constant 0 : i32
    return %c0_i32, %arg1 : i32, i32
  }
  func.func @transform_3(%arg0: i32, %arg1: i32) -> (i32, i32) {
    %c0_i32 = arith.constant 0 : i32
    %c0_i32_0 = arith.constant 0 : i32
    return %arg1, %c0_i32 : i32, i32
  }
  func.func @transform_4(%arg0: i32, %arg1: i32) -> (i32, i32) {
    %c0_i32 = arith.constant 0 : i32
    %c0_i32_0 = arith.constant 0 : i32
    %c0_i32_1 = arith.constant 0 : i32
    return %c0_i32, %c0_i32_0 : i32, i32
  }
  func.func @transform_5(%arg0: i32, %arg1: i32) -> (i32, i32) {
    %c0_i32 = arith.constant 0 : i32
    %c0_i32_0 = arith.constant 0 : i32
    return %arg0, %c0_i32 : i32, i32
  }
}

</mosaic_0001>

<llo_original>
// kernel: tpu_custom_call.1
$region0: #{tpu_custom_call.1}
  #allocation0 [shape = 'u32[]', space=smem, size = 0x4, offset = 0x4, fixed_abs, tag = 'smem constant byte address 0x4 - core index']
  #allocation1 [shape = 'u32[72,128]{1,0:T(1,128)}', space=vmem, size = 0x9000, scoped, tag = 'internal scratch']
  #allocation2 [shape = 'f32[16,128]{1,0:T(8,128)}', space=vmem, size = 0x2000, scoped, tag = 'scratch operand']
  %s0 = inlined_call_operand.hbm [shape: f32[16,128], index: 0, kind: input, shape index: {}]
  %s1 = inlined_call_operand.hbm [shape: f32[128,128], index: 1, kind: input, shape index: {}]
  %s2 = inlined_call_operand.vmem [shape: f32[1,128], index: 2, kind: input, shape index: {}]
  %s3 = inlined_call_operand.hbm [shape: f32[128,128], index: 3, kind: input, shape index: {}]
  %s4 = inlined_call_operand.hbm [shape: f32[3,128], index: 4, kind: input, shape index: {}]
  %s5 = inlined_call_operand.hbm [shape: f32[16,128], index: 5, kind: output, shape index: {}]
  %s6 = sld [smem:[#allocation0]]
  $region54: #{tpu_custom_call.1} parent=0
    _
  %s8 = ssub.s32 1, %s6
  %s9 = scalar_select 0, %s8, %s6
  $region1: #{tpu_custom_call.1} parent=0
    #allocation3 [shape = 'u8[8192]{0}', space=vmem, size = 0x2000, scoped, tag = 'input window, operand 0, single buffered']
    #allocation4 [shape = 's32[1]{0}', space=sflag, size = 0x4, scoped, tag = 'scoped memory for tpu_custom_call.1']
    #allocation5 [shape = 's32[1]{0}', space=sflag, size = 0x4, scoped, tag = 'scoped memory for tpu_custom_call.1']
    #allocation6 [shape = 'u8[65536]{0}', space=vmem, size = 0x10000, scoped, tag = 'input window, operand 1, single buffered']
    #allocation7 [shape = 's32[1]{0}', space=sflag, size = 0x4, scoped, tag = 'scoped memory for tpu_custom_call.1']
    #allocation8 [shape = 'u8[65536]{0}', space=vmem, size = 0x10000, scoped, tag = 'input window, operand 3, single buffered']
    #allocation9 [shape = 'u8[2048]{0}', space=vmem, size = 0x800, scoped, tag = 'input window, operand 4, single buffered']
    #allocation10 [shape = 's32[1]{0}', space=sflag, size = 0x4, scoped, tag = 'scoped memory for tpu_custom_call.1']
    #allocation11 [shape = 'u8[8192]{0}', space=vmem, size = 0x2000, scoped, tag = 'output window, operand 0, single buffered']
    %10 = vsyncpa [#allocation4], 0
    %11 = vsyncpa [#allocation7], 0
    %12 = vsyncpa [#allocation10], 0
    %13 = vsyncpa [#allocation5], 0
    // Predicated region
    $region2: #{tpu_custom_call.1} parent=1 // pred_check
      _
    $region3: #{tpu_custom_call.1} parent=1 // pred_check_branch
      %15 = sbr.rel (0) target = $region5
    $region4: #{tpu_custom_call.1} parent=1 // pred_region
      %17 = vsyncadd [#allocation4], 0
      %s18 = sshll.u32 %s0, 4
      %s19 = int_to_ptr.hbm [resolvable:$true] %s18
      %s20 = sshll.u32 [#allocation3], 4
      %s21 = int_to_ptr.vmem [resolvable:$true] %s20
      %26 = dma.hbm_to_vmem [thread:$0]  %s19, 256, %s21, [#allocation4], 128, 128, 8
    $region5: #{tpu_custom_call.1} parent=1 // pred_fallthru
      _
    // Predicated region
    $region6: #{tpu_custom_call.1} parent=1 // pred_check
      _
    $region7: #{tpu_custom_call.1} parent=1 // pred_check_branch
      %28 = sbr.rel (0) target = $region9
    $region8: #{tpu_custom_call.1} parent=1 // pred_region
      %30 = vsyncadd [#allocation7], 0
      %s31 = sshll.u32 %s1, 4
      %s32 = int_to_ptr.hbm [resolvable:$true] %s31
      %s33 = sshll.u32 [#allocation6], 4
      %s34 = int_to_ptr.vmem [resolvable:$true] %s33
      %39 = dma.hbm_to_vmem [thread:$0]  %s32, 2048, %s34, [#allocation7], 128, 128, 8
    $region9: #{tpu_custom_call.1} parent=1 // pred_fallthru
      _
    // Predicated region
    $region10: #{tpu_custom_call.1} parent=1 // pred_check
      _
    $region11: #{tpu_custom_call.1} parent=1 // pred_check_branch
      %41 = sbr.rel (0) target = $region13
    $region12: #{tpu_custom_call.1} parent=1 // pred_region
      _
    $region13: #{tpu_custom_call.1} parent=1 // pred_fallthru
      _
    // Predicated region
    $region14: #{tpu_custom_call.1} parent=1 // pred_check
      _
    $region15: #{tpu_custom_call.1} parent=1 // pred_check_branch
      %43 = sbr.rel (0) target = $region17
    $region16: #{tpu_custom_call.1} parent=1 // pred_region
      %45 = vsyncadd [#allocation7], 0
      %s46 = sshll.u32 %s3, 4
      %s47 = int_to_ptr.hbm [resolvable:$true] %s46
      %s48 = sshll.u32 [#allocation8], 4
      %s49 = int_to_ptr.vmem [resolvable:$true] %s48
      %54 = dma.hbm_to_vmem [thread:$0]  %s47, 2048, %s49, [#allocation7], 128, 128, 8
    $region17: #{tpu_custom_call.1} parent=1 // pred_fallthru
      _
    // Predicated region
    $region18: #{tpu_custom_call.1} parent=1 // pred_check
      _
    $region19: #{tpu_custom_call.1} parent=1 // pred_check_branch
      %56 = sbr.rel (0) target = $region21
    $region20: #{tpu_custom_call.1} parent=1 // pred_region
      %58 = vsyncadd [#allocation10], 0
      %s60 = sshll.u32 %s4, 4
      %s61 = int_to_ptr.hbm [resolvable:$true] %s60
      %s62 = sshll.u32 [#allocation9], 4
      %s63 = int_to_ptr.vmem [resolvable:$true] %s62
      %65 = dma.hbm_to_vmem [thread:$0]  %s61, 64, %s63, [#allocation10]
    $region21: #{tpu_custom_call.1} parent=1 // pred_fallthru
      _
    // Predicated region
    $region22: #{tpu_custom_call.1} parent=1 // pred_check
      _
    $region23: #{tpu_custom_call.1} parent=1 // pred_check_branch
      %67 = sbr.rel (0) target = $region25
    $region24: #{tpu_custom_call.1} parent=1 // pred_region
      %69 = dma.done [#allocation4], 256
    $region25: #{tpu_custom_call.1} parent=1 // pred_fallthru
      _
    // Predicated region
    $region26: #{tpu_custom_call.1} parent=1 // pred_check
      _
    $region27: #{tpu_custom_call.1} parent=1 // pred_check_branch
      %71 = sbr.rel (0) target = $region29
    $region28: #{tpu_custom_call.1} parent=1 // pred_region
      %73 = dma.done [#allocation7], 2048
    $region29: #{tpu_custom_call.1} parent=1 // pred_fallthru
      _
    // Predicated region
    $region30: #{tpu_custom_call.1} parent=1 // pred_check
      _
    $region31: #{tpu_custom_call.1} parent=1 // pred_check_branch
      %75 = sbr.rel (0) target = $region33
    $region32: #{tpu_custom_call.1} parent=1 // pred_region
      %77 = dma.done [#allocation7], 2048
    $region33: #{tpu_custom_call.1} parent=1 // pred_fallthru
      _
    // Predicated region
    $region34: #{tpu_custom_call.1} parent=1 // pred_check
      _
    $region35: #{tpu_custom_call.1} parent=1 // pred_check_branch
      %79 = sbr.rel (0) target = $region37
    $region36: #{tpu_custom_call.1} parent=1 // pred_region
      %81 = dma.done [#allocation10], 64
    $region37: #{tpu_custom_call.1} parent=1 // pred_fallthru
      _
    %v82 = vld [vmem:[#allocation3] sm:$0xff]
    %v83 = vld [vmem:[#allocation3 + $0x8] sm:$0xff]
    %v84 = vld [vmem:[#allocation6] sm:$0xff]
    %v85 = vld [vmem:[#allocation6 + $0x8] sm:$0xff]
    %v86 = vld [vmem:[#allocation6 + $0x10] sm:$0xff]
    %v87 = vld [vmem:[#allocation6 + $0x18] sm:$0xff]
    %v88 = vld [vmem:[#allocation6 + $0x20] sm:$0xff]
    %v89 = vld [vmem:[#allocation6 + $0x28] sm:$0xff]
    %v90 = vld [vmem:[#allocation6 + $0x30] sm:$0xff]
    %v91 = vld [vmem:[#allocation6 + $0x38] sm:$0xff]
    %v92 = vld [vmem:[#allocation6 + $0x40] sm:$0xff]
    %v93 = vld [vmem:[#allocation6 + $0x48] sm:$0xff]
    %v94 = vld [vmem:[#allocation6 + $0x50] sm:$0xff]
    %v95 = vld [vmem:[#allocation6 + $0x58] sm:$0xff]
    %v96 = vld [vmem:[#allocation6 + $0x60] sm:$0xff]
    %v97 = vld [vmem:[#allocation6 + $0x68] sm:$0xff]
    %v98 = vld [vmem:[#allocation6 + $0x70] sm:$0xff]
    %v99 = vld [vmem:[#allocation6 + $0x78] sm:$0xff]
    %v100 = vld [vmem:[%s2] sm:$0x1]
    %v102 = vperm.slane %v100, 0
    %104 = vmatpush.msra.mxu0 %v99
    %105 = vmatpush.msra.mxu0 %v98
    %106 = vmatpush.msra.mxu0 %v97
    %107 = vmatpush.msra.mxu0 %v96
    %108 = vmatpush.msra.mxu0 %v95
    %109 = vmatpush.msra.mxu0 %v94
    %110 = vmatpush.msra.mxu0 %v93
    %111 = vmatpush.msra.mxu0 %v92
    %112 = vmatpush.msra.mxu0 %v91
    %113 = vmatpush.msra.mxu0 %v90
    %114 = vmatpush.msra.mxu0 %v89
    %115 = vmatpush.msra.mxu0 %v88
    %116 = vmatpush.msra.mxu0 %v87
    %117 = vmatpush.msra.mxu0 %v86
    %118 = vmatpush.msra.mxu0 %v85
    %119 = vmatpush.msra.mxu0 %v84
    %120 = vmatmul.f32.gmra.mxu0 %v82
    %v121 = vpop.f32.mrf.mxu0
    %v122 = vadd.f32 %v102, %v121
    %123 = vmatmul.f32.gmra.mxu0 %v83
    %v124 = vpop.f32.mrf.mxu0
    %v125 = vadd.f32 %v102, %v124
    %126 = vdwg.mxu0
    %v127 = vmax.f32 %v122, 0.0
    %v128 = vmax.f32 %v125, 0.0
    %v129 = vld [vmem:[#allocation8] sm:$0xff]
    %v130 = vld [vmem:[#allocation8 + $0x8] sm:$0xff]
    %v131 = vld [vmem:[#allocation8 + $0x10] sm:$0xff]
    %v132 = vld [vmem:[#allocation8 + $0x18] sm:$0xff]
    %v133 = vld [vmem:[#allocation8 + $0x20] sm:$0xff]
    %v134 = vld [vmem:[#allocation8 + $0x28] sm:$0xff]
    %v135 = vld [vmem:[#allocation8 + $0x30] sm:$0xff]
    %v136 = vld [vmem:[#allocation8 + $0x38] sm:$0xff]
    %v137 = vld [vmem:[#allocation8 + $0x40] sm:$0xff]
    %v138 = vld [vmem:[#allocation8 + $0x48] sm:$0xff]
    %v139 = vld [vmem:[#allocation8 + $0x50] sm:$0xff]
    %v140 = vld [vmem:[#allocation8 + $0x58] sm:$0xff]
    %v141 = vld [vmem:[#allocation8 + $0x60] sm:$0xff]
    %v142 = vld [vmem:[#allocation8 + $0x68] sm:$0xff]
    %v143 = vld [vmem:[#allocation8 + $0x70] sm:$0xff]
    %v144 = vld [vmem:[#allocation8 + $0x78] sm:$0xff]
    %145 = vmatpush.msra.mxu0 %v144
    %146 = vmatpush.msra.mxu0 %v143
    %147 = vmatpush.msra.mxu0 %v142
    %148 = vmatpush.msra.mxu0 %v141
    %149 = vmatpush.msra.mxu0 %v140
    %150 = vmatpush.msra.mxu0 %v139
    %151 = vmatpush.msra.mxu0 %v138
    %152 = vmatpush.msra.mxu0 %v137
    %153 = vmatpush.msra.mxu0 %v136
    %154 = vmatpush.msra.mxu0 %v135
    %155 = vmatpush.msra.mxu0 %v134
    %156 = vmatpush.msra.mxu0 %v133
    %157 = vmatpush.msra.mxu0 %v132
    %158 = vmatpush.msra.mxu0 %v131
    %159 = vmatpush.msra.mxu0 %v130
    %160 = vmatpush.msra.mxu0 %v129
    %161 = vmatmul.f32.gmra.mxu0 %v127
    %v162 = vpop.f32.mrf.mxu0
    %v163 = vadd.f32 0.0, %v162
    %164 = vmatmul.f32.gmra.mxu0 %v128
    %v165 = vpop.f32.mrf.mxu0
    %v166 = vadd.f32 0.0, %v165
    %167 = vdwg.mxu0
    %p168 = scmp.eq.s32.totalorder 0, 0
    // Predicated region
    $region38: #{tpu_custom_call.1} parent=1 // pred_check
      %p169 = pneg %p168
    $region39: #{tpu_custom_call.1} parent=1 // pred_check_branch
      %171 = sbr.rel (%p169) target = $region41
    $region40: #{tpu_custom_call.1} parent=1 // pred_region
      %172 = vst [vmem:[#allocation2] sm:$0xff] 0.0
      %173 = vst [vmem:[#allocation2 + $0x8] sm:$0xff] 0.0
    $region41: #{tpu_custom_call.1} parent=1 // pred_fallthru
      _
    %v174 = vld [vmem:[#allocation2] sm:$0xff]
    %v175 = vld [vmem:[#allocation2 + $0x8] sm:$0xff]
    %v176 = vadd.f32 %v174, %v163
    %v177 = vadd.f32 %v175, %v166
    %178 = vst [vmem:[#allocation2] sm:$0xff] %v176
    %179 = vst [vmem:[#allocation2 + $0x8] sm:$0xff] %v177
    // Predicated region
    $region42: #{tpu_custom_call.1} parent=1 // pred_check
      %p180 = pneg %p168
    $region43: #{tpu_custom_call.1} parent=1 // pred_check_branch
      %182 = sbr.rel (%p180) target = $region45
    $region44: #{tpu_custom_call.1} parent=1 // pred_region
      %v183 = vld [vmem:[#allocation9] sm:$0x7]
      %v184 = vld [vmem:[#allocation2] sm:$0xff]
      %v185 = vld [vmem:[#allocation2 + $0x8] sm:$0xff]
      %v186 = vperm.slane %v183, 0
      %v187 = vadd.f32 %v184, %v186
      %v188 = vadd.f32 %v185, %v186
      %v189 = vadd.f32 %v187, %v82
      %v190 = vadd.f32 %v188, %v83
      %191 = vadd.xlane.f32.xlu0 %v189
      %v192 = vpop.xlane.xlu0 %191
      %193 = vadd.xlane.f32.xlu0 %v190
      %v194 = vpop.xlane.xlu0 %193
      %v195 = vmul.f32 %v189, %v189
      %v196 = vmul.f32 %v190, %v190
      %197 = vadd.xlane.f32.xlu0 %v195
      %v198 = vpop.xlane.xlu0 %197
      %199 = vadd.xlane.f32.xlu0 %v196
      %v200 = vpop.xlane.xlu0 %199
      %v201 = vmul.f32 %v192, 0.03125
      %v202 = vmul.f32 %v194, 0.03125
      %v203 = vmul.f32 %v198, 0.03125
      %v204 = vmul.f32 %v200, 0.03125
      %v205 = vmul.f32 %v201, %v201
      %v206 = vmul.f32 %v202, %v202
      %v207 = vsub.f32 %v203, %v205
      %v208 = vsub.f32 %v204, %v206
      %v209 = vsub.f32 %v189, %v201
      %v210 = vsub.f32 %v190, %v202
      %v211 = vadd.f32 %v207, 1e-05
      %v212 = vadd.f32 %v208, 1e-05
      %v213 = vrsqrt.pop %v211
      %v214 = vmul.f32 %v213, %v211
      %v215 = vmul.f32 %v214, %v213
      %v216 = vmul.f32 0.5, %v215
      %v217 = vsub.f32 1.5, %v216
      %v218 = vmul.f32 %v213, %v217
      %vm219 = vweird.f32 %v211
      %vm220 = vweird.f32 %v213
      %vm221 = vmor %vm219, %vm220
      %v222 = vsel %vm221, %v213, %v218
      %v223 = vrsqrt.pop %v212
      %v224 = vmul.f32 %v223, %v212
      %v225 = vmul.f32 %v224, %v223
      %v226 = vmul.f32 0.5, %v225
      %v227 = vsub.f32 1.5, %v226
      %v228 = vmul.f32 %v223, %v227
      %vm229 = vweird.f32 %v212
      %vm230 = vweird.f32 %v223
      %vm231 = vmor %vm229, %vm230
      %v232 = vsel %vm231, %v223, %v228
      %v233 = vmul.f32 %v209, %v222
      %v234 = vmul.f32 %v210, %v232
      %v235 = vperm.slane %v183, 1
      %v236 = vmul.f32 %v233, %v235
      %v237 = vmul.f32 %v234, %v235
      %v238 = vperm.slane %v183, 2
      %v239 = vadd.f32 %v236, %v238
      %v240 = vadd.f32 %v237, %v238
      %241 = vst [vmem:[#allocation11] sm:$0xff] %v239
      %242 = vst [vmem:[#allocation11 + $0x8] sm:$0xff] %v240
    $region45: #{tpu_custom_call.1} parent=1 // pred_fallthru
      _
    // Predicated region
    $region46: #{tpu_custom_call.1} parent=1 // pred_check
      _
    $region47: #{tpu_custom_call.1} parent=1 // pred_check_branch
      %244 = sbr.rel (0) target = $region49
    $region48: #{tpu_custom_call.1} parent=1 // pred_region
      %246 = vsyncadd [#allocation5], 0
      %s247 = sshll.u32 [#allocation11], 4
      %s248 = int_to_ptr.vmem [resolvable:$true] %s247
      %s249 = sshll.u32 %s5, 4
      %s250 = int_to_ptr.hbm [resolvable:$true] %s249
      %255 = dma.vmem_to_hbm [thread:$0]  %s248, 256, %s250, [#allocation5], 128, 128, 8
    $region49: #{tpu_custom_call.1} parent=1 // pred_fallthru
      _
    // Predicated region
    $region50: #{tpu_custom_call.1} parent=1 // pred_check
      _
    $region51: #{tpu_custom_call.1} parent=1 // pred_check_branch
      %257 = sbr.rel (0) target = $region53
    $region52: #{tpu_custom_call.1} parent=1 // pred_region
      %259 = dma.done [#allocation5], 256
    $region53: #{tpu_custom_call.1} parent=1 // pred_fallthru
      _
    %260 = vsyncpa [#allocation4], 1
    %261 = vsyncpa [#allocation7], 1
    %262 = vsyncpa [#allocation10], 1
    %263 = vsyncpa [#allocation5], 1

// kernel: tpu_custom_call.1
$region0: #{tpu_custom_call.1}
  #allocation0 [shape = 'u32[]', space=smem, size = 0x4, offset = 0x4, fixed_abs, tag = 'smem constant byte address 0x4 - core index']
  #allocation1 [shape = 'u32[72,128]{1,0:T(1,128)}', space=vmem, size = 0x9000, scoped, tag = 'internal scratch']
  #allocation2 [shape = 'f32[16,128]{1,0:T(8,128)}', space=vmem, size = 0x2000, scoped, tag = 'scratch operand']
  %s0 = inlined_call_operand.hbm [shape: f32[16,128], index: 0, kind: input, shape index: {}]
  %s1 = inlined_call_operand.hbm [shape: f32[128,128], index: 1, kind: input, shape index: {}]
  %s2 = inlined_call_operand.vmem [shape: f32[1,128], index: 2, kind: input, shape index: {}]
  %s3 = inlined_call_operand.hbm [shape: f32[128,128], index: 3, kind: input, shape index: {}]
  %s4 = inlined_call_operand.hbm [shape: f32[3,128], index: 4, kind: input, shape index: {}]
  %s5 = inlined_call_operand.hbm [shape: f32[16,128], index: 5, kind: output, shape index: {}]
  %s6 = sld [smem:[#allocation0]]
  $region54: #{tpu_custom_call.1} parent=0
    _
  %s8 = ssub.s32 1, %s6
  %s9 = scalar_select 0, %s8, %s6
  $region1: #{tpu_custom_call.1} parent=0
    #allocation3 [shape = 'u8[8192]{0}', space=vmem, size = 0x2000, scoped, tag = 'input window, operand 0, single buffered']
    #allocation4 [shape = 's32[1]{0}', space=sflag, size = 0x4, scoped, tag = 'scoped memory for tpu_custom_call.1']
    #allocation5 [shape = 's32[1]{0}', space=sflag, size = 0x4, scoped, tag = 'scoped memory for tpu_custom_call.1']
    #allocation6 [shape = 'u8[65536]{0}', space=vmem, size = 0x10000, scoped, tag = 'input window, operand 1, single buffered']
    #allocation7 [shape = 's32[1]{0}', space=sflag, size = 0x4, scoped, tag = 'scoped memory for tpu_custom_call.1']
    #allocation8 [shape = 'u8[65536]{0}', space=vmem, size = 0x10000, scoped, tag = 'input window, operand 3, single buffered']
    #allocation9 [shape = 'u8[2048]{0}', space=vmem, size = 0x800, scoped, tag = 'input window, operand 4, single buffered']
    #allocation10 [shape = 's32[1]{0}', space=sflag, size = 0x4, scoped, tag = 'scoped memory for tpu_custom_call.1']
    #allocation11 [shape = 'u8[8192]{0}', space=vmem, size = 0x2000, scoped, tag = 'output window, operand 0, single buffered']
    %10 = vsyncpa [#allocation4], 0
    %11 = vsyncpa [#allocation7], 0
    %12 = vsyncpa [#allocation10], 0
    %13 = vsyncpa [#allocation5], 0
    // Predicated region
    $region2: #{tpu_custom_call.1} parent=1 // pred_check
      _
    $region3: #{tpu_custom_call.1} parent=1 // pred_check_branch
      %15 = sbr.rel (0) target = $region5
    $region4: #{tpu_custom_call.1} parent=1 // pred_region
      %17 = vsyncadd [#allocation4], 0
      %s18 = sshll.u32 %s0, 4
      %s19 = int_to_ptr.hbm [resolvable:$true] %s18
      %s20 = sshll.u32 [#allocation3], 4
      %s21 = int_to_ptr.vmem [resolvable:$true] %s20
      %26 = dma.hbm_to_vmem [thread:$0]  %s19, 256, %s21, [#allocation4], 128, 128, 8
    $region5: #{tpu_custom_call.1} parent=1 // pred_fallthru
      _
    // Predicated region
    $region6: #{tpu_custom_call.1} parent=1 // pred_check
      _
    $region7: #{tpu_custom_call.1} parent=1 // pred_check_branch
      %28 = sbr.rel (0) target = $region9
    $region8: #{tpu_custom_call.1} parent=1 // pred_region
      %30 = vsyncadd [#allocation7], 0
      %s31 = sshll.u32 %s1, 4
      %s32 = int_to_ptr.hbm [resolvable:$true] %s31
      %s33 = sshll.u32 [#allocation6], 4
      %s34 = int_to_ptr.vmem [resolvable:$true] %s33
      %39 = dma.hbm_to_vmem [thread:$0]  %s32, 2048, %s34, [#allocation7], 128, 128, 8
    $region9: #{tpu_custom_call.1} parent=1 // pred_fallthru
      _
    // Predicated region
    $region10: #{tpu_custom_call.1} parent=1 // pred_check
      _
    $region11: #{tpu_custom_call.1} parent=1 // pred_check_branch
      %41 = sbr.rel (0) target = $region13
    $region12: #{tpu_custom_call.1} parent=1 // pred_region
      _
    $region13: #{tpu_custom_call.1} parent=1 // pred_fallthru
      _
    // Predicated region
    $region14: #{tpu_custom_call.1} parent=1 // pred_check
      _
    $region15: #{tpu_custom_call.1} parent=1 // pred_check_branch
      %43 = sbr.rel (0) target = $region17
    $region16: #{tpu_custom_call.1} parent=1 // pred_region
      %45 = vsyncadd [#allocation7], 0
      %s46 = sshll.u32 %s3, 4
      %s47 = int_to_ptr.hbm [resolvable:$true] %s46
      %s48 = sshll.u32 [#allocation8], 4
      %s49 = int_to_ptr.vmem [resolvable:$true] %s48
      %54 = dma.hbm_to_vmem [thread:$0]  %s47, 2048, %s49, [#allocation7], 128, 128, 8
    $region17: #{tpu_custom_call.1} parent=1 // pred_fallthru
      _
    // Predicated region
    $region18: #{tpu_custom_call.1} parent=1 // pred_check
      _
    $region19: #{tpu_custom_call.1} parent=1 // pred_check_branch
      %56 = sbr.rel (0) target = $region21
    $region20: #{tpu_custom_call.1} parent=1 // pred_region
      %58 = vsyncadd [#allocation10], 0
      %s60 = sshll.u32 %s4, 4
      %s61 = int_to_ptr.hbm [resolvable:$true] %s60
      %s62 = sshll.u32 [#allocation9], 4
      %s63 = int_to_ptr.vmem [resolvable:$true] %s62
      %65 = dma.hbm_to_vmem [thread:$0]  %s61, 64, %s63, [#allocation10]
    $region21: #{tpu_custom_call.1} parent=1 // pred_fallthru
      _
    // Predicated region
    $region22: #{tpu_custom_call.1} parent=1 // pred_check
      _
    $region23: #{tpu_custom_call.1} parent=1 // pred_check_branch
      %67 = sbr.rel (0) target = $region25
    $region24: #{tpu_custom_call.1} parent=1 // pred_region
      %69 = dma.done [#allocation4], 256
    $region25: #{tpu_custom_call.1} parent=1 // pred_fallthru
      _
    // Predicated region
    $region26: #{tpu_custom_call.1} parent=1 // pred_check
      _
    $region27: #{tpu_custom_call.1} parent=1 // pred_check_branch
      %71 = sbr.rel (0) target = $region29
    $region28: #{tpu_custom_call.1} parent=1 // pred_region
      %73 = dma.done [#allocation7], 2048
    $region29: #{tpu_custom_call.1} parent=1 // pred_fallthru
      _
    // Predicated region
    $region30: #{tpu_custom_call.1} parent=1 // pred_check
      _
    $region31: #{tpu_custom_call.1} parent=1 // pred_check_branch
      %75 = sbr.rel (0) target = $region33
    $region32: #{tpu_custom_call.1} parent=1 // pred_region
      %77 = dma.done [#allocation7], 2048
    $region33: #{tpu_custom_call.1} parent=1 // pred_fallthru
      _
    // Predicated region
    $region34: #{tpu_custom_call.1} parent=1 // pred_check
      _
    $region35: #{tpu_custom_call.1} parent=1 // pred_check_branch
      %79 = sbr.rel (0) target = $region37
    $region36: #{tpu_custom_call.1} parent=1 // pred_region
      %81 = dma.done [#allocation10], 64
    $region37: #{tpu_custom_call.1} parent=1 // pred_fallthru
      _
    %v82 = vld [vmem:[#allocation3] sm:$0xff]
    %v83 = vld [vmem:[#allocation3 + $0x8] sm:$0xff]
    %v84 = vld [vmem:[#allocation6] sm:$0xff]
    %v85 = vld [vmem:[#allocation6 + $0x8] sm:$0xff]
    %v86 = vld [vmem:[#allocation6 + $0x10] sm:$0xff]
    %v87 = vld [vmem:[#allocation6 + $0x18] sm:$0xff]
    %v88 = vld [vmem:[#allocation6 + $0x20] sm:$0xff]
    %v89 = vld [vmem:[#allocation6 + $0x28] sm:$0xff]
    %v90 = vld [vmem:[#allocation6 + $0x30] sm:$0xff]
    %v91 = vld [vmem:[#allocation6 + $0x38] sm:$0xff]
    %v92 = vld [vmem:[#allocation6 + $0x40] sm:$0xff]
    %v93 = vld [vmem:[#allocation6 + $0x48] sm:$0xff]
    %v94 = vld [vmem:[#allocation6 + $0x50] sm:$0xff]
    %v95 = vld [vmem:[#allocation6 + $0x58] sm:$0xff]
    %v96 = vld [vmem:[#allocation6 + $0x60] sm:$0xff]
    %v97 = vld [vmem:[#allocation6 + $0x68] sm:$0xff]
    %v98 = vld [vmem:[#allocation6 + $0x70] sm:$0xff]
    %v99 = vld [vmem:[#allocation6 + $0x78] sm:$0xff]
    %v100 = vld [vmem:[%s2] sm:$0x1]
    %v102 = vperm.slane %v100, 0
    %104 = vmatpush.msra.mxu0 %v99
    %105 = vmatpush.msra.mxu0 %v98
    %106 = vmatpush.msra.mxu0 %v97
    %107 = vmatpush.msra.mxu0 %v96
    %108 = vmatpush.msra.mxu0 %v95
    %109 = vmatpush.msra.mxu0 %v94
    %110 = vmatpush.msra.mxu0 %v93
    %111 = vmatpush.msra.mxu0 %v92
    %112 = vmatpush.msra.mxu0 %v91
    %113 = vmatpush.msra.mxu0 %v90
    %114 = vmatpush.msra.mxu0 %v89
    %115 = vmatpush.msra.mxu0 %v88
    %116 = vmatpush.msra.mxu0 %v87
    %117 = vmatpush.msra.mxu0 %v86
    %118 = vmatpush.msra.mxu0 %v85
    %119 = vmatpush.msra.mxu0 %v84
    %120 = vmatmul.f32.gmra.mxu0 %v82
    %v121 = vpop.f32.mrf.mxu0
    %v122 = vadd.f32 %v102, %v121
    %123 = vmatmul.f32.gmra.mxu0 %v83
    %v124 = vpop.f32.mrf.mxu0
    %v125 = vadd.f32 %v102, %v124
    %126 = vdwg.mxu0
    %v127 = vmax.f32 %v122, 0.0
    %v128 = vmax.f32 %v125, 0.0
    %v129 = vld [vmem:[#allocation8] sm:$0xff]
    %v130 = vld [vmem:[#allocation8 + $0x8] sm:$0xff]
    %v131 = vld [vmem:[#allocation8 + $0x10] sm:$0xff]
    %v132 = vld [vmem:[#allocation8 + $0x18] sm:$0xff]
    %v133 = vld [vmem:[#allocation8 + $0x20] sm:$0xff]
    %v134 = vld [vmem:[#allocation8 + $0x28] sm:$0xff]
    %v135 = vld [vmem:[#allocation8 + $0x30] sm:$0xff]
    %v136 = vld [vmem:[#allocation8 + $0x38] sm:$0xff]
    %v137 = vld [vmem:[#allocation8 + $0x40] sm:$0xff]
    %v138 = vld [vmem:[#allocation8 + $0x48] sm:$0xff]
    %v139 = vld [vmem:[#allocation8 + $0x50] sm:$0xff]
    %v140 = vld [vmem:[#allocation8 + $0x58] sm:$0xff]
    %v141 = vld [vmem:[#allocation8 + $0x60] sm:$0xff]
    %v142 = vld [vmem:[#allocation8 + $0x68] sm:$0xff]
    %v143 = vld [vmem:[#allocation8 + $0x70] sm:$0xff]
    %v144 = vld [vmem:[#allocation8 + $0x78] sm:$0xff]
    %145 = vmatpush.msra.mxu0 %v144
    %146 = vmatpush.msra.mxu0 %v143
    %147 = vmatpush.msra.mxu0 %v142
    %148 = vmatpush.msra.mxu0 %v141
    %149 = vmatpush.msra.mxu0 %v140
    %150 = vmatpush.msra.mxu0 %v139
    %151 = vmatpush.msra.mxu0 %v138
    %152 = vmatpush.msra.mxu0 %v137
    %153 = vmatpush.msra.mxu0 %v136
    %154 = vmatpush.msra.mxu0 %v135
    %155 = vmatpush.msra.mxu0 %v134
    %156 = vmatpush.msra.mxu0 %v133
    %157 = vmatpush.msra.mxu0 %v132
    %158 = vmatpush.msra.mxu0 %v131
    %159 = vmatpush.msra.mxu0 %v130
    %160 = vmatpush.msra.mxu0 %v129
    %161 = vmatmul.f32.gmra.mxu0 %v127
    %v162 = vpop.f32.mrf.mxu0
    %v163 = vadd.f32 0.0, %v162
    %164 = vmatmul.f32.gmra.mxu0 %v128
    %v165 = vpop.f32.mrf.mxu0
    %v166 = vadd.f32 0.0, %v165
    %167 = vdwg.mxu0
    %p168 = scmp.eq.s32.totalorder 0, 0
    // Predicated region
    $region38: #{tpu_custom_call.1} parent=1 // pred_check
      %p169 = pneg %p168
    $region39: #{tpu_custom_call.1} parent=1 // pred_check_branch
      %171 = sbr.rel (%p169) target = $region41
    $region40: #{tpu_custom_call.1} parent=1 // pred_region
      %172 = vst [vmem:[#allocation2] sm:$0xff] 0.0
      %173 = vst [vmem:[#allocation2 + $0x8] sm:$0xff] 0.0
    $region41: #{tpu_custom_call.1} parent=1 // pred_fallthru
      _
    %v174 = vld [vmem:[#allocation2] sm:$0xff]
    %v175 = vld [vmem:[#allocation2 + $0x8] sm:$0xff]
    %v176 = vadd.f32 %v174, %v163
    %v177 = vadd.f32 %v175, %v166
    %178 = vst [vmem:[#allocation2] sm:$0xff] %v176
    %179 = vst [vmem:[#allocation2 + $0x8] sm:$0xff] %v177
    // Predicated region
    $region42: #{tpu_custom_call.1} parent=1 // pred_check
      %p180 = pneg %p168
    $region43: #{tpu_custom_call.1} parent=1 // pred_check_branch
      %182 = sbr.rel (%p180) target = $region45
    $region44: #{tpu_custom_call.1} parent=1 // pred_region
      %v183 = vld [vmem:[#allocation9] sm:$0x7]
      %v184 = vld [vmem:[#allocation2] sm:$0xff]
      %v185 = vld [vmem:[#allocation2 + $0x8] sm:$0xff]
      %v186 = vperm.slane %v183, 0
      %v187 = vadd.f32 %v184, %v186
      %v188 = vadd.f32 %v185, %v186
      %v189 = vadd.f32 %v187, %v82
      %v190 = vadd.f32 %v188, %v83
      %191 = vadd.xlane.f32.xlu0 %v189
      %v192 = vpop.xlane.xlu0 %191
      %193 = vadd.xlane.f32.xlu0 %v190
      %v194 = vpop.xlane.xlu0 %193
      %v195 = vmul.f32 %v189, %v189
      %v196 = vmul.f32 %v190, %v190
      %197 = vadd.xlane.f32.xlu0 %v195
      %v198 = vpop.xlane.xlu0 %197
      %199 = vadd.xlane.f32.xlu0 %v196
      %v200 = vpop.xlane.xlu0 %199
      %v201 = vmul.f32 %v192, 0.03125
      %v202 = vmul.f32 %v194, 0.03125
      %v203 = vmul.f32 %v198, 0.03125
      %v204 = vmul.f32 %v200, 0.03125
      %v205 = vmul.f32 %v201, %v201
      %v206 = vmul.f32 %v202, %v202
      %v207 = vsub.f32 %v203, %v205
      %v208 = vsub.f32 %v204, %v206
      %v209 = vsub.f32 %v189, %v201
      %v210 = vsub.f32 %v190, %v202
      %v211 = vadd.f32 %v207, 1e-05
      %v212 = vadd.f32 %v208, 1e-05
      %v213 = vrsqrt.pop %v211
      %v214 = vmul.f32 %v213, %v211
      %v215 = vmul.f32 %v214, %v213
      %v216 = vmul.f32 0.5, %v215
      %v217 = vsub.f32 1.5, %v216
      %v218 = vmul.f32 %v213, %v217
      %vm219 = vweird.f32 %v211
      %vm220 = vweird.f32 %v213
      %vm221 = vmor %vm219, %vm220
      %v222 = vsel %vm221, %v213, %v218
      %v223 = vrsqrt.pop %v212
      %v224 = vmul.f32 %v223, %v212
      %v225 = vmul.f32 %v224, %v223
      %v226 = vmul.f32 0.5, %v225
      %v227 = vsub.f32 1.5, %v226
      %v228 = vmul.f32 %v223, %v227
      %vm229 = vweird.f32 %v212
      %vm230 = vweird.f32 %v223
      %vm231 = vmor %vm229, %vm230
      %v232 = vsel %vm231, %v223, %v228
      %v233 = vmul.f32 %v209, %v222
      %v234 = vmul.f32 %v210, %v232
      %v235 = vperm.slane %v183, 1
      %v236 = vmul.f32 %v233, %v235
      %v237 = vmul.f32 %v234, %v235
      %v238 = vperm.slane %v183, 2
      %v239 = vadd.f32 %v236, %v238
      %v240 = vadd.f32 %v237, %v238
      %241 = vst [vmem:[#allocation11] sm:$0xff] %v239
      %242 = vst [vmem:[#allocation11 + $0x8] sm:$0xff] %v240
    $region45: #{tpu_custom_call.1} parent=1 // pred_fallthru
      _
    // Predicated region
    $region46: #{tpu_custom_call.1} parent=1 // pred_check
      _
    $region47: #{tpu_custom_call.1} parent=1 // pred_check_branch
      %244 = sbr.rel (0) target = $region49
    $region48: #{tpu_custom_call.1} parent=1 // pred_region
      %246 = vsyncadd [#allocation5], 0
      %s247 = sshll.u32 [#allocation11], 4
      %s248 = int_to_ptr.vmem [resolvable:$true] %s247
      %s249 = sshll.u32 %s5, 4
      %s250 = int_to_ptr.hbm [resolvable:$true] %s249
      %255 = dma.vmem_to_hbm [thread:$0]  %s248, 256, %s250, [#allocation5], 128, 128, 8
    $region49: #{tpu_custom_call.1} parent=1 // pred_fallthru
      _
    // Predicated region
    $region50: #{tpu_custom_call.1} parent=1 // pred_check
      _
    $region51: #{tpu_custom_call.1} parent=1 // pred_check_branch
      %257 = sbr.rel (0) target = $region53
    $region52: #{tpu_custom_call.1} parent=1 // pred_region
      %259 = dma.done [#allocation5], 256
    $region53: #{tpu_custom_call.1} parent=1 // pred_fallthru
      _
    %260 = vsyncpa [#allocation4], 1
    %261 = vsyncpa [#allocation7], 1
    %262 = vsyncpa [#allocation10], 1
    %263 = vsyncpa [#allocation5], 1

</llo_original>
